<compile_context>
chip_gen: v7x
topology: tpu7x:2x2x1
jax: 0.10.0
libtpu: 0.0.40
codegen_flags: <defaults>
</compile_context>

<pallas_src>
import functools

import jax
import jax.numpy as jnp
from jax.experimental import pallas as pl
from jax.experimental.pallas import tpu as pltpu


# -----------------------------------------------------------------------------
# Backbone kernel: GAP (in-kernel reduction) -> linear -> ReLU, tiled over N
# -----------------------------------------------------------------------------
def _backbone_kernel(x_ref, wb_ref, bb_ref, feat_ref, *, inv_hw):
    # GAP over spatial (f32 accumulate): (n_blk, C, HW) -> (n_blk, C)
    gap = jnp.sum(x_ref[...].astype(jnp.float32), axis=-1) * inv_hw
    # small (C, F_pad) projection + bias + ReLU; bf16 MXU inputs, f32 accumulation
    f = jnp.dot(gap.astype(jnp.bfloat16), wb_ref[...],
                preferred_element_type=jnp.float32) + bb_ref[...]
    feat_ref[...] = jnp.maximum(f, 0.0).astype(feat_ref.dtype)


def backbone_forward(x3, wb, bb):
    """x3: (N, C, HW) bf16;  wb: (C, F_pad) bf16;  bb: (1, F_pad) f32 -> (N, F_pad) bf16."""
    n, c, hw = x3.shape
    f_pad = wb.shape[1]
    n_blk = min(n, 256)
    grid = (pl.cdiv(n, n_blk),)
    return pl.pallas_call(
        functools.partial(_backbone_kernel, inv_hw=1.0 / float(hw)),
        grid_spec=pltpu.PrefetchScalarGridSpec(
            num_scalar_prefetch=0,
            grid=grid,
            in_specs=[
                pl.BlockSpec((n_blk, c, hw), lambda i: (i, 0, 0)),   # x tile
                pl.BlockSpec((c, f_pad), lambda i: (0, 0)),          # wb (resident, small)
                pl.BlockSpec((1, f_pad), lambda i: (0, 0)),          # bb
            ],
            out_specs=pl.BlockSpec((n_blk, f_pad), lambda i: (i, 0)),
        ),
        out_shape=jax.ShapeDtypeStruct((n, f_pad), jnp.bfloat16),
        compiler_params=pltpu.CompilerParams(
            dimension_semantics=("parallel",)),      # batch tiles are independent
    )(x3, wb, bb)


# -----------------------------------------------------------------------------
# Heads kernel (train): per-task logits + label-smoothing loss
# -----------------------------------------------------------------------------
def _heads_train_kernel(slice_ref, nc_ref,                  # SMEM scalar prefetch
                        feat_ref, w_ref, b_ref, tgt_ref,    # inputs
                        loss_ref,                           # output (1, 8, 128)
                        *, eps):
    k = pl.program_id(0)

    # head-k logits for the whole batch (lane-dense, padded classes)
    logits = jnp.dot(feat_ref[...], w_ref[...],
                     preferred_element_type=jnp.float32) + b_ref[...]   # (N, Cpad) f32
    n, c_pad = logits.shape

    s0 = slice_ref[k]
    s1 = slice_ref[k + 1]
    ck = nc_ref[k]
    inv_ck = 1.0 / ck.astype(jnp.float32)        # scalar; no per-row vector divide

    cols = jax.lax.broadcasted_iota(jnp.int32, (n, c_pad), 1)
    rows = jax.lax.broadcasted_iota(jnp.int32, (n, 1), 0)
    col_valid = cols < ck

    # numerically stable masked log-softmax over the ck valid classes
    z_full = jnp.where(col_valid, logits, -1e30)
    m = jnp.max(z_full, axis=-1, keepdims=True)                         # (N, 1)
    z = z_full - m
    lse = jnp.log(jnp.sum(jnp.exp(z), axis=-1, keepdims=True))          # (N, 1)

    # LSR: loss_i = lse_i - sum_c q_c * z_c  with q = (1-eps)*onehot + eps/ck
    # -> ONE fused masked reduction (replaces separate z_tgt / sum_z passes).
    tmask = jnp.logical_and(cols == tgt_ref[...], col_valid)
    w_q = jnp.where(tmask, (1.0 - eps) + eps * inv_ck,
                    jnp.where(col_valid, eps * inv_ck, 0.0))
    qz = jnp.sum(w_q * z, axis=-1, keepdims=True)                       # (N, 1)
    per_sample = lse - qz

    # rows outside this task's [s0, s1) slice contribute nothing; guard empty slices
    row_valid = jnp.logical_and(rows >= s0, rows < s1)
    masked = jnp.where(row_valid, per_sample, 0.0)
    denom = jnp.maximum(s1 - s0, 1).astype(jnp.float32)                 # scalar
    loss = jnp.sum(masked, axis=0, keepdims=True) / denom               # (1, 1)

    # lane-dense padded store; host reads [:, 0, 0]
    loss_ref[...] = jnp.broadcast_to(loss.reshape(1, 1, 1), loss_ref.shape)


def multitask_train_forward(feat, w_all, b_all, target, slice_idx, num_classes_arr,
                            *, eps):
    n, f_pad = feat.shape
    t, _, c_pad = w_all.shape
    grid_spec = pltpu.PrefetchScalarGridSpec(
        num_scalar_prefetch=2,
        grid=(t,),
        in_specs=[
            pl.BlockSpec((n, f_pad), lambda k, *_: (0, 0)),                   # feat (resident, tiny)
            pl.BlockSpec((pl.Squeezed(), f_pad, c_pad), lambda k, *_: (k, 0, 0)),  # W_all[k]
            pl.BlockSpec((pl.Squeezed(), 1, c_pad), lambda k, *_: (k, 0, 0)),      # B_all[k]
            pl.BlockSpec((n, 1), lambda k, *_: (0, 0)),                       # targets (resident)
        ],
        out_specs=pl.BlockSpec((1, 8, 128), lambda k, *_: (k, 0, 0)),
    )
    return pl.pallas_call(
        functools.partial(_heads_train_kernel, eps=eps),
        grid_spec=grid_spec,
        out_shape=jax.ShapeDtypeStruct((t, 8, 128), jnp.float32),
        compiler_params=pltpu.CompilerParams(
            # no cross-task state -> heads can be sharded across TensorCores (v7x)
            dimension_semantics=("parallel",)),
    )(slice_idx, num_classes_arr, feat, w_all, b_all, target)


# -----------------------------------------------------------------------------
# Heads kernel (eval): per-task logits, bf16 writeback
# -----------------------------------------------------------------------------
def _heads_eval_kernel(feat_ref, w_ref, b_ref, out_ref):
    logits = jnp.dot(feat_ref[...], w_ref[...],
                     preferred_element_type=jnp.float32) + b_ref[...]   # (N, Cpad) f32
    out_ref[...] = logits[None, :, :].astype(out_ref.dtype)             # bf16 store


def multitask_eval_forward(feat, w_all, b_all):
    n, f_pad = feat.shape
    t, _, c_pad = w_all.shape
    grid_spec = pltpu.PrefetchScalarGridSpec(
        num_scalar_prefetch=0,
        grid=(t,),
        in_specs=[
            pl.BlockSpec((n, f_pad), lambda k: (0, 0)),
            pl.BlockSpec((pl.Squeezed(), f_pad, c_pad), lambda k: (k, 0, 0)),
            pl.BlockSpec((pl.Squeezed(), 1, c_pad), lambda k: (k, 0, 0)),
        ],
        out_specs=pl.BlockSpec((1, n, c_pad), lambda k: (k, 0, 0)),
    )
    return pl.pallas_call(
        _heads_eval_kernel,
        grid_spec=grid_spec,
        out_shape=jax.ShapeDtypeStruct((t, n, c_pad), jnp.bfloat16),   # bf16 writeback
        compiler_params=pltpu.CompilerParams(
            dimension_semantics=("parallel",)),
    )(feat, w_all, b_all)


# -----------------------------------------------------------------------------
# Module wrapper
# -----------------------------------------------------------------------------
class MultiTaskWithLossPallas:
    def __init__(self, num_classes, feature_dim, in_channels, spatial_size, key,
                 eps=0.1):
        self.num_classes = list(num_classes)
        self.num_tasks = len(self.num_classes)
        self.feature_dim = feature_dim
        self.eps = eps
        h, w = spatial_size
        self.hw = h * w

        # lane-aligned feature dim (also the heads' MXU K dim)
        # TODO(synk): for v6e/v7x prefer a multiple of 256 to fill the MXU K dimension.
        f_pad = pl.cdiv(feature_dim, 128) * 128
        self.f_pad = f_pad

        keys = jax.random.split(key, 2 + 2 * self.num_tasks)
        # synthetic backbone params: GAP -> linear -> ReLU (GAP is done in-kernel;
        # no more jnp.repeat(wb / HW) K-inflation of the projection)
        wb = jax.random.normal(keys[0], (in_channels, feature_dim), jnp.float32) * 0.1
        bb = jax.random.normal(keys[1], (1, feature_dim), jnp.float32) * 0.01
        wb_pad = jnp.zeros((in_channels, f_pad), jnp.float32).at[:, :feature_dim].set(wb)
        bb_pad = jnp.zeros((1, f_pad), jnp.float32).at[:, :feature_dim].set(bb)
        self.wb = wb_pad.astype(jnp.bfloat16)
        self.bb = bb_pad                      # bias stays f32 (added post-accumulation)

        # pack all FC heads into one lane-dense, zero-padded weight/bias tensor
        c_pad = max(pl.cdiv(c, 128) * 128 for c in self.num_classes)
        self.c_pad = c_pad
        w_all = jnp.zeros((self.num_tasks, f_pad, c_pad), jnp.float32)
        b_all = jnp.zeros((self.num_tasks, 1, c_pad), jnp.float32)
        for k in range(self.num_tasks):
            ck = self.num_classes[k]
            wk = jax.random.normal(keys[2 + 2 * k], (feature_dim, ck), jnp.float32) * 0.1
            bk = jax.random.normal(keys[3 + 2 * k], (1, ck), jnp.float32) * 0.01
            w_all = w_all.at[k, :feature_dim, :ck].set(wk)
            b_all = b_all.at[k, :, :ck].set(bk)
        self.w_all = w_all.astype(jnp.bfloat16)
        self.b_all = b_all

    def __call__(self, x, target=None, slice_idx=None, eval_mode=False):
        n, c, h, w = x.shape
        x3 = x.reshape(n, c, h * w).astype(jnp.bfloat16)
        # backbone: its own N-tiled kernel; only the tiny (N, F_pad) bf16 feature
        # round-trips through HBM.
        feat = backbone_forward(x3, self.wb, self.bb)
        if eval_mode:
            logits_all = multitask_eval_forward(feat, self.w_all, self.b_all)
            return [logits_all[k, :, :self.num_classes[k]].astype(jnp.float32)
                    for k in range(self.num_tasks)]
        # TODO(synk): mixup branch (mix_alpha) relies on external callables.
        slice_arr = jnp.asarray(slice_idx, dtype=jnp.int32)
        nc_arr = jnp.asarray(self.num_classes, dtype=jnp.int32)
        tgt = target.reshape(-1, 1).astype(jnp.int32)
        loss_out = multitask_train_forward(
            feat, self.w_all, self.b_all, tgt, slice_arr, nc_arr, eps=self.eps)
        return [loss_out[k, 0, 0] for k in range(self.num_tasks)]


# -----------------------------------------------------------------------------
# Pure-JAX reference (same synthetic backbone / dtypes) for validation
# -----------------------------------------------------------------------------
def _ref_lsr_loss(logits, targets, eps):
    ck = logits.shape[-1]
    z = logits - jnp.max(logits, axis=-1, keepdims=True)
    logp = z - jnp.log(jnp.sum(jnp.exp(z), axis=-1, keepdims=True))
    onehot = jax.nn.one_hot(targets, ck, dtype=jnp.float32)
    q = (1.0 - eps) * onehot + eps / float(ck)
    return -jnp.mean(jnp.sum(q * logp, axis=-1))


def _reference_forward(model, x, target, slice_idx):
    n, c = x.shape[0], x.shape[1]
    x_bf = x.reshape(n, c, -1).astype(jnp.bfloat16).astype(jnp.float32)
    gap = jnp.mean(x_bf, axis=-1)
    gap = gap.astype(jnp.bfloat16).astype(jnp.float32)
    feat = jnp.maximum(gap @ model.wb.astype(jnp.float32) + model.bb, 0.0)
    feat = feat.astype(jnp.bfloat16).astype(jnp.float32)
    logits, losses = [], []
    for k, ck in enumerate(model.num_classes):
        lg = feat @ model.w_all[k].astype(jnp.float32)[:, :ck] + model.b_all[k, 0, :ck]
        logits.append(lg)
        s0, s1 = slice_idx[k], slice_idx[k + 1]
        losses.append(_ref_lsr_loss(lg[s0:s1], target[s0:s1], model.eps))
    return logits, losses


# -----------------------------------------------------------------------------
if __name__ == "__main__":
    key = jax.random.PRNGKey(0)
    k_x, k_t0, k_t1, k_params = jax.random.split(key, 4)

    # batch=8, channels=4, spatial=16x16, feature_dim=32, two tasks (10 / 16 classes)
    N, C, H, W = 8, 4, 16, 16
    feature_dim = 32
    num_classes = [10, 16]
    slice_idx = [0, 4, 8]

    x = jax.random.normal(k_x, (N, C, H, W), jnp.float32)
    tgt0 = jax.random.randint(k_t0, (4,), 0, num_classes[0], jnp.int32)
    tgt1 = jax.random.randint(k_t1, (4,), 0, num_classes[1], jnp.int32)
    target = jnp.concatenate([tgt0, tgt1], axis=0)

    model = MultiTaskWithLossPallas(num_classes, feature_dim, C, (H, W), k_params)

    # training path: list of per-task LSR losses (scalars)
    losses = model(x, target=target, slice_idx=slice_idx, eval_mode=False)
    losses = [jax.block_until_ready(l) for l in losses]

    # eval path: list of per-task logits
    logits = model(x, eval_mode=True)
    logits = [jax.block_until_ready(l) for l in logits]

    ref_logits, ref_losses = _reference_forward(model, x, target, slice_idx)

    ok = True
    for k in range(len(num_classes)):
        ok = ok and bool(jnp.isfinite(losses[k]))
        ok = ok and (logits[k].shape == (N, num_classes[k]))
        ok = ok and bool(jnp.allclose(losses[k], ref_losses[k], rtol=2e-2, atol=2e-2))
        ok = ok and bool(jnp.allclose(logits[k], ref_logits[k], rtol=2e-2, atol=2e-2))
    if ok:
        print("KERNEL_OK")
</pallas_src>

<mosaic_0001>
module attributes {stable_mosaic.version = 11 : i64} {
  func.func @_backbone_kernel(%arg0: i32, %arg1: memref<8x4x256xbf16, #tpu.memory_space<vmem>>, %arg2: memref<4x128xbf16, #tpu.memory_space<vmem>>, %arg3: memref<1x128xf32, #tpu.memory_space<vmem>>, %arg4: memref<8x128xbf16, #tpu.memory_space<vmem>>) attributes {dimension_semantics = [#tpu.dimension_semantics<parallel>], iteration_bounds = array<i64: 1>, scalar_prefetch = 0 : i64, scratch_operands = 0 : i64, tpu.core_type = #tpu.core_type<tc>, window_params = [{transform_indices = @transform_0, window_bounds = array<i64: 8, 4, 256>}, {pipeline_mode = #tpu.pipeline_mode<synchronous>, transform_indices = @transform_1, window_bounds = array<i64: 4, 128>}, {pipeline_mode = #tpu.pipeline_mode<synchronous>, transform_indices = @transform_2, window_bounds = array<i64: 1, 128>}, {transform_indices = @transform_3, window_bounds = array<i64: 8, 128>}]} {
    %c0 = arith.constant 0 : index
    %c0_0 = arith.constant 0 : index
    %c0_1 = arith.constant 0 : index
    %0 = vector.load %arg1[%c0, %c0_0, %c0_1] : memref<8x4x256xbf16, #tpu.memory_space<vmem>>, vector<8x4x256xbf16>
    %1 = arith.extf %0 : vector<8x4x256xbf16> to vector<8x4x256xf32>
    %cst = arith.constant dense<0.000000e+00> : vector<8x4xf32>
    %2 = vector.multi_reduction <add>, %1, %cst [2] : vector<8x4x256xf32> to vector<8x4xf32>
    %cst_2 = arith.constant 3.906250e-03 : f32
    %3 = vector.broadcast %cst_2 : f32 to vector<8x4xf32>
    %4 = arith.mulf %2, %3 : vector<8x4xf32>
    %5 = arith.truncf %4 : vector<8x4xf32> to vector<8x4xbf16>
    %c0_3 = arith.constant 0 : index
    %c0_4 = arith.constant 0 : index
    %6 = vector.load %arg2[%c0_3, %c0_4] : memref<4x128xbf16, #tpu.memory_space<vmem>>, vector<4x128xbf16>
    %cst_5 = arith.constant dense<0.000000e+00> : vector<8x128xf32>
    %7 = tpu.matmul %5, %6, %cst_5 {dimension_numbers = #tpu.dot_dimension_numbers<[1], [0], [0], [1], [0, 0, 1, 1], [], []>} : vector<8x4xbf16>, vector<4x128xbf16>, vector<8x128xf32> -> vector<8x128xf32>
    %c0_6 = arith.constant 0 : index
    %c0_7 = arith.constant 0 : index
    %8 = vector.load %arg3[%c0_6, %c0_7] : memref<1x128xf32, #tpu.memory_space<vmem>>, vector<1x128xf32>
    %9 = vector.broadcast %8 : vector<1x128xf32> to vector<8x128xf32>
    %10 = arith.addf %7, %9 : vector<8x128xf32>
    %cst_8 = arith.constant 0.000000e+00 : f32
    %11 = vector.broadcast %cst_8 : f32 to vector<8x128xf32>
    %12 = arith.maximumf %10, %11 : vector<8x128xf32>
    %13 = arith.truncf %12 : vector<8x128xf32> to vector<8x128xbf16>
    %c0_9 = arith.constant 0 : index
    %c0_10 = arith.constant 0 : index
    %14 = vector.load %arg4[%c0_9, %c0_10] : memref<8x128xbf16, #tpu.memory_space<vmem>>, vector<8x128xbf16>
    tpu.vector_store %arg4[%c0_9, %c0_10], %13 {strides = array<i32>} : memref<8x128xbf16, #tpu.memory_space<vmem>>, vector<8x128xbf16>,
    return
  }
  func.func @transform_0(%arg0: i32) -> (i32, i32, i32) {
    %c0_i32 = arith.constant 0 : i32
    %c0_i32_0 = arith.constant 0 : i32
    %c0_i32_1 = arith.constant 0 : i32
    return %arg0, %c0_i32, %c0_i32_0 : i32, i32, i32
  }
  func.func @transform_1(%arg0: i32) -> (i32, i32) {
    %c0_i32 = arith.constant 0 : i32
    %c0_i32_0 = arith.constant 0 : i32
    %c0_i32_1 = arith.constant 0 : i32
    return %c0_i32, %c0_i32_0 : i32, i32
  }
  func.func @transform_2(%arg0: i32) -> (i32, i32) {
    %c0_i32 = arith.constant 0 : i32
    %c0_i32_0 = arith.constant 0 : i32
    %c0_i32_1 = arith.constant 0 : i32
    return %c0_i32, %c0_i32_0 : i32, i32
  }
  func.func @transform_3(%arg0: i32) -> (i32, i32) {
    %c0_i32 = arith.constant 0 : i32
    %c0_i32_0 = arith.constant 0 : i32
    return %arg0, %c0_i32 : i32, i32
  }
}

</mosaic_0001>

<llo_original>
// kernel: tpu_custom_call.1
$region0: #{tpu_custom_call.1}
  #allocation0 [shape = 'u32[]', space=smem, size = 0x4, offset = 0x4, fixed_abs, tag = 'smem constant byte address 0x4 - core index']
  #allocation1 [shape = 'u32[144,128]{1,0:T(1,128)}', space=vmem, size = 0x12000, scoped, tag = 'internal scratch']
  %s0 = inlined_call_operand.hbm [shape: bf16[8,4,256], index: 0, kind: input, shape index: {}]
  %s1 = inlined_call_operand.vmem [shape: bf16[4,128], index: 1, kind: input, shape index: {}]
  %s2 = inlined_call_operand.vmem [shape: f32[1,128], index: 2, kind: input, shape index: {}]
  %s3 = inlined_call_operand.hbm [shape: bf16[8,128], index: 3, kind: output, shape index: {}]
  %s4 = sld [smem:[#allocation0]]
  $region26: #{tpu_custom_call.1} parent=0
    _
  %s6 = ssub.s32 1, %s4
  %s7 = scalar_select 0, %s6, %s4
  $region1: #{tpu_custom_call.1} parent=0
    #allocation2 [shape = 'u8[16384]{0}', space=vmem, size = 0x4000, scoped, tag = 'input window, operand 0, single buffered']
    #allocation3 [shape = 's32[1]{0}', space=sflag, size = 0x4, scoped, tag = 'scoped memory for tpu_custom_call.1']
    #allocation4 [shape = 's32[1]{0}', space=sflag, size = 0x4, scoped, tag = 'scoped memory for tpu_custom_call.1']
    #allocation5 [shape = 'u8[2048]{0}', space=vmem, size = 0x800, scoped, tag = 'output window, operand 0, single buffered']
    %8 = vsyncpa [#allocation3], 0
    %9 = vsyncpa [#allocation4], 0
    // Predicated region
    $region2: #{tpu_custom_call.1} parent=1 // pred_check
      _
    $region3: #{tpu_custom_call.1} parent=1 // pred_check_branch
      %11 = sbr.rel (0) target = $region5
    $region4: #{tpu_custom_call.1} parent=1 // pred_region
      %s13 = ssub.s32 512, 512
      %14 = vsyncadd [#allocation3], %s13
      %s15 = sshll.u32 [#allocation2], 4
      %s16 = int_to_ptr.vmem [resolvable:$true] %s15
      %21 = dma.hbm_to_vmem [thread:$0]  %s0, 512, %s16, [#allocation3], 64, 64, 4
    $region5: #{tpu_custom_call.1} parent=1 // pred_fallthru
      _
    // Predicated region
    $region6: #{tpu_custom_call.1} parent=1 // pred_check
      _
    $region7: #{tpu_custom_call.1} parent=1 // pred_check_branch
      %23 = sbr.rel (0) target = $region9
    $region8: #{tpu_custom_call.1} parent=1 // pred_region
      _
    $region9: #{tpu_custom_call.1} parent=1 // pred_fallthru
      _
    // Predicated region
    $region10: #{tpu_custom_call.1} parent=1 // pred_check
      _
    $region11: #{tpu_custom_call.1} parent=1 // pred_check_branch
      %25 = sbr.rel (0) target = $region13
    $region12: #{tpu_custom_call.1} parent=1 // pred_region
      _
    $region13: #{tpu_custom_call.1} parent=1 // pred_fallthru
      _
    // Predicated region
    $region14: #{tpu_custom_call.1} parent=1 // pred_check
      _
    $region15: #{tpu_custom_call.1} parent=1 // pred_check_branch
      %27 = sbr.rel (0) target = $region17
    $region16: #{tpu_custom_call.1} parent=1 // pred_region
      %28 = dma.done [#allocation3], 512
    $region17: #{tpu_custom_call.1} parent=1 // pred_fallthru
      _
    %v30 = vld [vmem:[#allocation2] sm:$0xf]
    %v31 = vld [vmem:[#allocation2 + $0x4] sm:$0xf]
    %v32 = vld [vmem:[#allocation2 + $0x8] sm:$0xf]
    %v33 = vld [vmem:[#allocation2 + $0xc] sm:$0xf]
    %v34 = vld [vmem:[#allocation2 + $0x10] sm:$0xf]
    %v35 = vld [vmem:[#allocation2 + $0x14] sm:$0xf]
    %v36 = vld [vmem:[#allocation2 + $0x18] sm:$0xf]
    %v37 = vld [vmem:[#allocation2 + $0x1c] sm:$0xf]
    %v38 = vunpack.c.l.bf16 %v30
    %v39 = vunpack.c.l.bf16 %v31
    %v40 = vunpack.c.l.bf16 %v32
    %v41 = vunpack.c.l.bf16 %v33
    %v42 = vunpack.c.l.bf16 %v34
    %v43 = vunpack.c.l.bf16 %v35
    %v44 = vunpack.c.l.bf16 %v36
    %v45 = vunpack.c.l.bf16 %v37
    %v54 = vcombine.high %v38, %v38
    %v55 = vcombine.high %v39, %v39
    %v56 = vcombine.high %v40, %v40
    %v57 = vcombine.high %v41, %v41
    %v58 = vcombine.high %v42, %v42
    %v59 = vcombine.high %v43, %v43
    %v60 = vcombine.high %v44, %v44
    %v61 = vcombine.high %v45, %v45
    %vm70 = vcmask 1043456
    %v71 = vsel %vm70, %v38, 0.0
    %v72 = vsel %vm70, %v54, 0.0
    %v73 = vadd.f32 %v71, %v72
    %74 = vadd.xlane.f32.xlu0 %v73
    %v75 = vpop.xlane.xlu0 %74
    %v76 = vsel %vm70, %v39, 0.0
    %v77 = vsel %vm70, %v55, 0.0
    %v78 = vadd.f32 %v76, %v77
    %79 = vadd.xlane.f32.xlu0 %v78
    %v80 = vpop.xlane.xlu0 %79
    %v81 = vsel %vm70, %v40, 0.0
    %v82 = vsel %vm70, %v56, 0.0
    %v83 = vadd.f32 %v81, %v82
    %84 = vadd.xlane.f32.xlu0 %v83
    %v85 = vpop.xlane.xlu0 %84
    %v86 = vsel %vm70, %v41, 0.0
    %v87 = vsel %vm70, %v57, 0.0
    %v88 = vadd.f32 %v86, %v87
    %89 = vadd.xlane.f32.xlu0 %v88
    %v90 = vpop.xlane.xlu0 %89
    %v91 = vsel %vm70, %v42, 0.0
    %v92 = vsel %vm70, %v58, 0.0
    %v93 = vadd.f32 %v91, %v92
    %94 = vadd.xlane.f32.xlu0 %v93
    %v95 = vpop.xlane.xlu0 %94
    %v96 = vsel %vm70, %v43, 0.0
    %v97 = vsel %vm70, %v59, 0.0
    %v98 = vadd.f32 %v96, %v97
    %99 = vadd.xlane.f32.xlu0 %v98
    %v100 = vpop.xlane.xlu0 %99
    %v101 = vsel %vm70, %v44, 0.0
    %v102 = vsel %vm70, %v60, 0.0
    %v103 = vadd.f32 %v101, %v102
    %104 = vadd.xlane.f32.xlu0 %v103
    %v105 = vpop.xlane.xlu0 %104
    %v106 = vsel %vm70, %v45, 0.0
    %v107 = vsel %vm70, %v61, 0.0
    %v108 = vadd.f32 %v106, %v107
    %109 = vadd.xlane.f32.xlu0 %v108
    %v110 = vpop.xlane.xlu0 %109
    %v111 = vmul.f32 %v75, 0.00390625
    %v112 = vmul.f32 %v80, 0.00390625
    %v113 = vmul.f32 %v85, 0.00390625
    %v114 = vmul.f32 %v90, 0.00390625
    %v115 = vmul.f32 %v95, 0.00390625
    %v116 = vmul.f32 %v100, 0.00390625
    %v117 = vmul.f32 %v105, 0.00390625
    %v118 = vmul.f32 %v110, 0.00390625
    %v119 = vpack.c.bf16 %v111, %v111
    %v120 = vpack.c.bf16 %v112, %v112
    %v121 = vpack.c.bf16 %v113, %v113
    %v122 = vpack.c.bf16 %v114, %v114
    %v123 = vpack.c.bf16 %v115, %v115
    %v124 = vpack.c.bf16 %v116, %v116
    %v125 = vpack.c.bf16 %v117, %v117
    %v126 = vpack.c.bf16 %v118, %v118
    %v127 = vld [vmem:[%s1] sm:$0x3]
    %v128 = vld [vmem:[%s2] sm:$0x1]
    %v130 = vlaneseq
    %v131 = vshrl.u32 %v130, 7
    %v132 = vsub.s32 0, %v131
    %v133 = vrot.slane %v128, %v132
    %v143 = vunpack.c.l.b16 %v119
    %v144 = vunpack.c.l.b16 %v120
    %v145 = vunpack.c.l.b16 %v121
    %v146 = vunpack.c.l.b16 %v122
    %v147 = vunpack.c.l.b16 %v123
    %v148 = vunpack.c.l.b16 %v124
    %v149 = vunpack.c.l.b16 %v125
    %v150 = vunpack.c.l.b16 %v126
    %v151 = vlaneseq
    %v152 = vand.u32 %v151, 127
    %v153 = vlaneseq
    %v154 = vshrl.u32 %v153, 7
    %v155 = vsub.s32 %v152, %v154
    %v156 = vrot.slane %v143, %v155
    %v157 = vlaneseq
    %v158 = vshrl.u32 %v157, 7
    %v159 = vsub.s32 %v152, %v158
    %v160 = vrot.slane %v144, %v159
    %v161 = vlaneseq
    %v162 = vshrl.u32 %v161, 7
    %v163 = vsub.s32 %v152, %v162
    %v164 = vrot.slane %v145, %v163
    %v165 = vlaneseq
    %v166 = vshrl.u32 %v165, 7
    %v167 = vsub.s32 %v152, %v166
    %v168 = vrot.slane %v146, %v167
    %v169 = vlaneseq
    %v170 = vshrl.u32 %v169, 7
    %v171 = vsub.s32 %v152, %v170
    %v172 = vrot.slane %v147, %v171
    %v173 = vlaneseq
    %v174 = vshrl.u32 %v173, 7
    %v175 = vsub.s32 %v152, %v174
    %v176 = vrot.slane %v148, %v175
    %v177 = vlaneseq
    %v178 = vshrl.u32 %v177, 7
    %v179 = vsub.s32 %v152, %v178
    %v180 = vrot.slane %v149, %v179
    %v181 = vlaneseq
    %v182 = vshrl.u32 %v181, 7
    %v183 = vsub.s32 %v152, %v182
    %v184 = vrot.slane %v150, %v183
    %vm185 = vcmask 1041409
    %v186 = vsel %vm185, %v160, %v156
    %vm187 = vcmask 1042434
    %v188 = vsel %vm187, %v164, %v186
    %vm189 = vcmask 1043459
    %v190 = vsel %vm189, %v168, %v188
    %vm191 = vcmask 1044484
    %v192 = vsel %vm191, %v172, %v190
    %vm193 = vcmask 1045509
    %v194 = vsel %vm193, %v176, %v192
    %vm195 = vcmask 1046534
    %v196 = vsel %vm195, %v180, %v194
    %vm197 = vcmask 1047559
    %v198 = vsel %vm197, %v184, %v196
    %v199 = vpack.c.b16 %v198, %v198
    %vm200 = vcmask 31744
    %v202 = vsel %vm200, %v199, 0
    %vm204 = vcmask 1041408
    %v206 = vsel %vm204, %v127, 0
    %208 = vmatprep.subr.bf16.mxu0 0
    %209 = vmatpush1.bf16.msra.mxu0 %v206
    %210 = vmatprep.subr.bf16.mxu0 0
    %211 = vmatpush1.bf16.msra.mxu0 0
    %212 = vmatprep.subr.bf16.mxu0 0
    %213 = vmatpush1.bf16.msra.mxu0 0
    %214 = vmatprep.subr.bf16.mxu0 0
    %215 = vmatpush1.bf16.msra.mxu0 0
    %216 = vmatprep.subr.bf16.mxu0 0
    %217 = vmatpush1.bf16.msra.mxu0 0
    %218 = vmatprep.subr.bf16.mxu0 0
    %219 = vmatpush1.bf16.msra.mxu0 0
    %220 = vmatprep.subr.bf16.mxu0 0
    %221 = vmatpush1.bf16.msra.mxu0 0
    %222 = vmatprep.subr.bf16.mxu0 0
    %223 = vmatpush1.bf16.msra.mxu0 0
    %224 = vmatprep.subr.bf16.mxu0 0
    %225 = vmatpush1.bf16.msra.mxu0 0
    %226 = vmatprep.subr.bf16.mxu0 0
    %227 = vmatpush1.bf16.msra.mxu0 0
    %228 = vmatprep.subr.bf16.mxu0 0
    %229 = vmatpush1.bf16.msra.mxu0 0
    %230 = vmatprep.subr.bf16.mxu0 0
    %231 = vmatpush1.bf16.msra.mxu0 0
    %232 = vmatprep.subr.bf16.mxu0 0
    %233 = vmatpush1.bf16.msra.mxu0 0
    %234 = vmatprep.subr.bf16.mxu0 0
    %235 = vmatpush1.bf16.msra.mxu0 0
    %236 = vmatprep.subr.bf16.mxu0 0
    %237 = vmatpush1.bf16.msra.mxu0 0
    %238 = vmatprep.subr.bf16.mxu0 0
    %239 = vmatpush1.bf16.msra.mxu0 0
    %240 = vmatprep.mubr.bf16.mxu0 0
    %241 = vmatmul.mubr.bf16.gmra.mrb[0].mxu0 %v202
    %v242 = vpop.f32.mrb[0].mxu0
    %v243 = vadd.f32 %v133, %v242
    %v244 = vpop.f32.mrb[0].mxu0
    %v245 = vpop.f32.mrb[0].mxu0
    %v246 = vpop.f32.mrb[0].mxu0
    %247 = vdwg.mxu0
    %v248 = vmax.f32 %v243, 0.0
    %v249 = vpack.c.bf16 %v248, %v248
    %250 = vst [vmem:[#allocation5] sm:$0xf] %v249
    // Predicated region
    $region18: #{tpu_custom_call.1} parent=1 // pred_check
      _
    $region19: #{tpu_custom_call.1} parent=1 // pred_check_branch
      %252 = sbr.rel (0) target = $region21
    $region20: #{tpu_custom_call.1} parent=1 // pred_region
      %s254 = ssub.s32 64, 64
      %255 = vsyncadd [#allocation4], %s254
      %s257 = sshll.u32 [#allocation5], 4
      %s258 = int_to_ptr.vmem [resolvable:$true] %s257
      %260 = dma.vmem_to_hbm [thread:$0]  %s258, 64, %s3, [#allocation4]
    $region21: #{tpu_custom_call.1} parent=1 // pred_fallthru
      _
    // Predicated region
    $region22: #{tpu_custom_call.1} parent=1 // pred_check
      _
    $region23: #{tpu_custom_call.1} parent=1 // pred_check_branch
      %262 = sbr.rel (0) target = $region25
    $region24: #{tpu_custom_call.1} parent=1 // pred_region
      %263 = dma.done [#allocation4], 64
    $region25: #{tpu_custom_call.1} parent=1 // pred_fallthru
      _
    %264 = vsyncpa [#allocation3], 1
    %265 = vsyncpa [#allocation4], 1

</llo_original>
